<compile_context>
chip_gen: v7x
topology: tpu7x:2x2x1
jax: 0.10.0
libtpu: 0.0.40
codegen_flags: <defaults>
</compile_context>

<pallas_src>
import jax
import jax.numpy as jnp
from jax import lax
from jax.experimental import pallas as pl
from jax.experimental.pallas import tpu as pltpu

EPS = 1e-5


def _round_up(x, m):
    return ((x + m - 1) // m) * m


def _vmem_capacity_bytes():
    try:
        return int(pltpu.get_tpu_info().vmem_capacity_bytes)
    except Exception:
        return 64 * 1024 * 1024          # conservative default (v7x per-TC VMEM)


# ---------------------------------------------------------------------------
# Pass 1: per-graph statistics.
#   grid = (C//tc, N//tn); node axis last ("arbitrary"), stats block (B, 2*tc)
#   has a constant node index -> resident accumulator (init/finalize pl.when).
# ---------------------------------------------------------------------------
def _stats_kernel(x_ref, oh_ref, inv_cnt_ref, params_ref, stats_ref):
    n = pl.program_id(1)

    @pl.when(n == 0)
    def _init():
        stats_ref[...] = jnp.zeros_like(stats_ref)

    tc = x_ref.shape[1]
    x32 = x_ref[...].astype(jnp.float32)                         # [tn, tc]
    xcat = jnp.concatenate([x32, x32 * x32], axis=1)             # [tn, 2*tc]
    oh = oh_ref[...]                                             # [tn, B]
    # Fused segment-sum of x and x*x: contract the node axis in one MXU pass.
    stats_ref[...] += lax.dot_general(
        oh, xcat.astype(oh.dtype),
        dimension_numbers=(((0,), (0,)), ((), ())),
        preferred_element_type=jnp.float32)                      # [B, 2*tc]

    @pl.when(n == pl.num_programs(1) - 1)
    def _finalize():
        inv_cnt = inv_cnt_ref[...]                               # [B, 1] f32
        ms = params_ref[...][2:3, :].astype(jnp.float32)         # [1, tc] mean_scale
        s = stats_ref[...]
        mean = s[:, :tc] * inv_cnt                               # E[x]    per graph
        ex2 = s[:, tc:] * inv_cnt                                # E[x^2]  per graph
        # var(out) with out = x - ms*mean:  E[x^2] + mean^2*(ms^2 - 2*ms).
        var = jnp.maximum(ex2 + mean * mean * (ms * ms - 2.0 * ms), 0.0)
        invstd = lax.rsqrt(var + EPS)                            # rsqrt on B rows only
        stats_ref[...] = jnp.concatenate([mean * ms, invstd], axis=1)


# ---------------------------------------------------------------------------
# Pass 2: normalize node tiles; one gather-back matmul for [mean*ms | invstd].
# ---------------------------------------------------------------------------
def _normalize_kernel(x_ref, oh_ref, stats_ref, params_ref, o_ref):
    tc = x_ref.shape[1]
    oh32 = oh_ref[...].astype(jnp.float32)                       # [tn, B]
    g = jnp.dot(oh32, stats_ref[...],
                preferred_element_type=jnp.float32)              # [tn, 2*tc]
    mean_ms = g[:, :tc]
    invstd = g[:, tc:]
    p = params_ref[...].astype(jnp.float32)                      # [3, tc]
    w, b = p[0:1, :], p[1:2, :]
    x32 = x_ref[...].astype(jnp.float32)
    o_ref[...] = (w * (x32 - mean_ms) * invstd + b).astype(o_ref.dtype)


def _estimate_bytes(tn, tc, b_pad, xitem, mitem):
    return (4 * tn * tc * xitem           # x tile + out tile, double buffered
            + 2 * tn * b_pad * mitem      # one-hot tile, double buffered
            + 16 * b_pad * tc             # stats block [B, 2*tc] f32 (x2)
            + 24 * tc + 8 * b_pad         # params / inv_cnt
            + 24 * tn * tc)               # f32 in-kernel temps ([tn, 2*tc] etc.)


def _choose_tiles(n_nodes, c_pad, b_pad, xitem, mitem, vmem_cap):
    """Largest (node_tile, channel_tile) whose working set fits the VMEM budget."""
    budget = int(0.40 * vmem_cap)
    n_cap = max(8, _round_up(n_nodes, 8))
    tn_cands = [n_cap] + [t for t in (2048, 1024, 512, 256, 128, 64, 32, 16, 8)
                          if t < n_cap]
    tc_cands = [t for t in range(c_pad, 0, -128) if c_pad % t == 0]
    for tc in tc_cands:                    # widest channel tile first (lane-dense stores)
        for tn in tn_cands:
            if _estimate_bytes(tn, tc, b_pad, xitem, mitem) <= budget:
                return tn, tc
    return 8, 128


def norm_wrapper_forward(node_feat, batch_index, weight, bias, mean_scale, *,
                         num_graphs=None, node_tile=None, channel_tile=None,
                         matmul_dtype=None):
    """NormWrapper.forward(node_feat=..., batch_index=...) for a GraphNorm bn."""
    N, C = node_feat.shape
    if num_graphs is None:
        # Eager-only convenience (forces a device sync); pass num_graphs under jit.
        num_graphs = int(batch_index.max()) + 1
    b_pad = max(8, _round_up(num_graphs, 8))

    if matmul_dtype is None:
        # bf16 operands when the features are already bf16 (exact for the 0/1
        # one-hot; a precision knob for the x / x*x statistics); f32 otherwise.
        matmul_dtype = (jnp.bfloat16 if node_feat.dtype == jnp.bfloat16
                        else jnp.float32)

    xitem = jnp.dtype(node_feat.dtype).itemsize
    mitem = jnp.dtype(matmul_dtype).itemsize
    vmem_cap = _vmem_capacity_bytes()

    c_pad = _round_up(C, 128)
    tn_auto, tc_auto = _choose_tiles(N, c_pad, b_pad, xitem, mitem, vmem_cap)
    tc = tc_auto if channel_tile is None else max(128, _round_up(channel_tile, 128))
    tn = tn_auto if node_tile is None else max(8, _round_up(node_tile, 8))
    c_pad = _round_up(c_pad, tc)
    n_pad = _round_up(max(N, tn), tn)

    est = _estimate_bytes(tn, tc, b_pad, xitem, mitem)
    vmem_limit = int(min(0.75 * vmem_cap, max(4 * est, 16 * 1024 * 1024)))

    # Graph-invariant precompute (one O(N*B) pass, outside both grids).
    oh32 = jax.nn.one_hot(batch_index, b_pad, dtype=jnp.float32)         # [N, B]
    cnt = oh32.sum(axis=0)                                               # [B]
    inv_cnt = (1.0 / jnp.maximum(cnt, 1.0)).reshape(b_pad, 1)            # clamp: empty graphs
    oh = jnp.pad(oh32, ((0, n_pad - N), (0, 0))).astype(matmul_dtype)    # zero rows = padded nodes
    x = jnp.pad(node_feat, ((0, n_pad - N), (0, c_pad - C)))
    params = jnp.pad(jnp.stack([weight, bias, mean_scale], axis=0),
                     ((0, 0), (0, c_pad - C))).astype(jnp.float32)       # [3, C_pad]

    grid = (c_pad // tc, n_pad // tn)

    # Pass 1: per-graph [mean*ms | invstd] statistics, shape [B, 2*C_pad].
    stats = pl.pallas_call(
        _stats_kernel,
        out_shape=jax.ShapeDtypeStruct((b_pad, 2 * c_pad), jnp.float32),
        grid_spec=pltpu.PrefetchScalarGridSpec(
            num_scalar_prefetch=0, grid=grid,
            in_specs=[
                pl.BlockSpec((tn, tc), lambda c, n: (n, c)),         # x tile
                pl.BlockSpec((tn, b_pad), lambda c, n: (n, 0)),      # one-hot tile
                pl.BlockSpec((b_pad, 1), lambda c, n: (0, 0)),       # 1/count
                pl.BlockSpec((3, tc), lambda c, n: (0, c)),          # [w; b; ms]
            ],
            out_specs=pl.BlockSpec((b_pad, 2 * tc), lambda c, n: (0, c))),
        compiler_params=pltpu.CompilerParams(
            dimension_semantics=("parallel", "arbitrary"),
            vmem_limit_bytes=vmem_limit),
    )(x, oh, inv_cnt, params)

    # Pass 2: normalize every node tile with the gathered statistics.
    out = pl.pallas_call(
        _normalize_kernel,
        out_shape=jax.ShapeDtypeStruct((n_pad, c_pad), node_feat.dtype),
        grid_spec=pltpu.PrefetchScalarGridSpec(
            num_scalar_prefetch=0, grid=grid,
            in_specs=[
                pl.BlockSpec((tn, tc), lambda c, n: (n, c)),         # x tile
                pl.BlockSpec((tn, b_pad), lambda c, n: (n, 0)),      # one-hot tile
                pl.BlockSpec((b_pad, 2 * tc), lambda c, n: (0, c)),  # stats tile
                pl.BlockSpec((3, tc), lambda c, n: (0, c)),          # [w; b; ms]
            ],
            out_specs=pl.BlockSpec((tn, tc), lambda c, n: (n, c))),
        compiler_params=pltpu.CompilerParams(
            dimension_semantics=("parallel", "parallel"),
            vmem_limit_bytes=vmem_limit),
    )(x, oh, stats, params)

    return out[:N, :C]


def ref_graph_norm(x, batch, w, b, ms, num_graphs, eps=EPS):
    """Pure-JAX reference (mirrors torch_geometric.nn.GraphNorm.forward)."""
    one_hot = jax.nn.one_hot(batch, num_graphs, dtype=jnp.float32)
    cnt = jnp.maximum(one_hot.sum(0), 1.0)
    x32 = x.astype(jnp.float32)
    mean = (one_hot.T @ x32) / cnt[:, None]
    out = x32 - mean[batch] * ms
    var = (one_hot.T @ (out * out)) / cnt[:, None]
    return (w * out / jnp.sqrt(var[batch] + eps) + b).astype(x.dtype)


if __name__ == "__main__":
    key = jax.random.PRNGKey(0)
    k1, k2, k3 = jax.random.split(key, 3)

    # --- Case 1: small aligned problem (2 graphs: 7 + 9 nodes), auto tiles. ---
    N, C, G = 16, 512, 2
    x = jax.random.normal(k1, (N, C), dtype=jnp.float32)
    batch = jnp.array([0] * 7 + [1] * 9, dtype=jnp.int32)
    w = 0.5 + jnp.arange(C, dtype=jnp.float32) / C
    b = 0.01 * jnp.arange(C, dtype=jnp.float32)
    ms = 1.0 - 0.5 * jnp.arange(C, dtype=jnp.float32) / C

    out = jax.block_until_ready(
        norm_wrapper_forward(x, batch, w, b, ms, num_graphs=G))
    ref = ref_graph_norm(x, batch, w, b, ms, G)
    assert out.shape == (N, C) and out.dtype == x.dtype
    assert jnp.allclose(out, ref, rtol=1e-4, atol=1e-4), "case 1 mismatch"

    # --- Case 2: multi-step grids on both axes (forced small tiles). ---
    N2, C2, G2 = 96, 256, 5
    sizes = [10, 30, 25, 11, 20]
    x2 = jax.random.normal(k2, (N2, C2), dtype=jnp.float32)
    batch2 = jnp.concatenate(
        [jnp.full((s,), i, dtype=jnp.int32) for i, s in enumerate(sizes)])
    w2 = jnp.linspace(0.5, 1.5, C2, dtype=jnp.float32)
    b2 = jnp.linspace(-0.2, 0.2, C2, dtype=jnp.float32)
    ms2 = jnp.linspace(1.0, 0.5, C2, dtype=jnp.float32)

    out2 = jax.block_until_ready(
        norm_wrapper_forward(x2, batch2, w2, b2, ms2, num_graphs=G2,
                             node_tile=32, channel_tile=128))
    ref2 = ref_graph_norm(x2, batch2, w2, b2, ms2, G2)
    assert out2.shape == (N2, C2)
    assert jnp.allclose(out2, ref2, rtol=1e-4, atol=1e-4), "case 2 mismatch"

    # --- Case 3: unaligned N / C (exercises node + channel padding). ---
    N3, C3, G3 = 13, 200, 3
    x3 = jax.random.normal(k3, (N3, C3), dtype=jnp.float32)
    batch3 = jnp.array([0] * 4 + [1] * 6 + [2] * 3, dtype=jnp.int32)
    w3 = jnp.ones((C3,), jnp.float32)
    b3 = jnp.zeros((C3,), jnp.float32)
    ms3 = jnp.ones((C3,), jnp.float32)

    out3 = jax.block_until_ready(
        norm_wrapper_forward(x3, batch3, w3, b3, ms3, num_graphs=G3))
    ref3 = ref_graph_norm(x3, batch3, w3, b3, ms3, G3)
    assert out3.shape == (N3, C3)
    assert jnp.allclose(out3, ref3, rtol=1e-4, atol=1e-4), "case 3 mismatch"

    print("KERNEL_OK")
</pallas_src>

<mosaic_0001>
module attributes {stable_mosaic.version = 11 : i64} {
  func.func @_stats_kernel(%arg0: i32, %arg1: i32, %arg2: memref<16x512xf32, #tpu.memory_space<vmem>>, %arg3: memref<16x8xf32, #tpu.memory_space<vmem>>, %arg4: memref<8x1xf32, #tpu.memory_space<vmem>>, %arg5: memref<3x512xf32, #tpu.memory_space<vmem>>, %arg6: memref<8x1024xf32, #tpu.memory_space<vmem>>) attributes {dimension_semantics = [#tpu.dimension_semantics<parallel>, #tpu.dimension_semantics<arbitrary>], iteration_bounds = array<i64: 1, 1>, scalar_prefetch = 0 : i64, scratch_operands = 0 : i64, tpu.core_type = #tpu.core_type<tc>, window_params = [{transform_indices = @transform_0, window_bounds = array<i64: 16, 512>}, {transform_indices = @transform_1, window_bounds = array<i64: 16, 8>}, {pipeline_mode = #tpu.pipeline_mode<synchronous>, transform_indices = @transform_2, window_bounds = array<i64: 8, 1>}, {transform_indices = @transform_3, window_bounds = array<i64: 3, 512>}, {transform_indices = @transform_4, window_bounds = array<i64: 8, 1024>}]} {
    %c0_i32 = arith.constant 0 : i32
    %0 = arith.cmpi eq, %arg1, %c0_i32 : i32
    %1 = arith.extui %0 : i1 to i32
    %c0_i32_0 = arith.constant 0 : i32
    %2 = arith.cmpi ne, %1, %c0_i32_0 : i32
    scf.if %2 {
      %cst_10 = arith.constant 0.000000e+00 : f32
      %14 = vector.broadcast %cst_10 : f32 to vector<8x1024xf32>
      %c0_11 = arith.constant 0 : index
      %c0_12 = arith.constant 0 : index
      %15 = vector.load %arg6[%c0_11, %c0_12] : memref<8x1024xf32, #tpu.memory_space<vmem>>, vector<8x1024xf32>
      tpu.vector_store %arg6[%c0_11, %c0_12], %14 {strides = array<i32>} : memref<8x1024xf32, #tpu.memory_space<vmem>>, vector<8x1024xf32>,
    } else {
    }
    %c0 = arith.constant 0 : index
    %c0_1 = arith.constant 0 : index
    %3 = vector.load %arg2[%c0, %c0_1] : memref<16x512xf32, #tpu.memory_space<vmem>>, vector<16x512xf32>
    %4 = arith.mulf %3, %3 : vector<16x512xf32>
    %5 = tpu.concatenate %3, %4 in 1 : vector<16x512xf32>, vector<16x512xf32> -> vector<16x1024xf32>
    %c0_2 = arith.constant 0 : index
    %c0_3 = arith.constant 0 : index
    %6 = vector.load %arg3[%c0_2, %c0_3] : memref<16x8xf32, #tpu.memory_space<vmem>>, vector<16x8xf32>
    %c0_4 = arith.constant 0 : index
    %c0_5 = arith.constant 0 : index
    %7 = vector.load %arg6[%c0_4, %c0_5] : memref<8x1024xf32, #tpu.memory_space<vmem>>, vector<8x1024xf32>
    %cst = arith.constant dense<0.000000e+00> : vector<8x1024xf32>
    %8 = tpu.matmul %6, %5, %cst {dimension_numbers = #tpu.dot_dimension_numbers<[0], [0], [1], [1], [0, 1, 1, 1], [], []>} : vector<16x8xf32>, vector<16x1024xf32>, vector<8x1024xf32> -> vector<8x1024xf32>
    %9 = arith.addf %7, %8 : vector<8x1024xf32>
    %c0_6 = arith.constant 0 : index
    %c0_7 = arith.constant 0 : index
    %10 = vector.load %arg6[%c0_6, %c0_7] : memref<8x1024xf32, #tpu.memory_space<vmem>>, vector<8x1024xf32>
    tpu.vector_store %arg6[%c0_6, %c0_7], %9 {strides = array<i32>} : memref<8x1024xf32, #tpu.memory_space<vmem>>, vector<8x1024xf32>,
    %c0_i32_8 = arith.constant 0 : i32
    %11 = arith.cmpi eq, %arg1, %c0_i32_8 : i32
    %12 = arith.extui %11 : i1 to i32
    %c0_i32_9 = arith.constant 0 : i32
    %13 = arith.cmpi ne, %12, %c0_i32_9 : i32
    scf.if %13 {
      %c0_10 = arith.constant 0 : index
      %c0_11 = arith.constant 0 : index
      %14 = vector.load %arg4[%c0_10, %c0_11] : memref<8x1xf32, #tpu.memory_space<vmem>>, vector<8x1xf32>
      %c0_12 = arith.constant 0 : index
      %c0_13 = arith.constant 0 : index
      %15 = vector.load %arg5[%c0_12, %c0_13] : memref<3x512xf32, #tpu.memory_space<vmem>>, vector<3x512xf32>
      %16 = vector.extract_strided_slice %15 {offsets = [2, 0], sizes = [1, 512], strides = [1, 1]} : vector<3x512xf32> to vector<1x512xf32>
      %c0_14 = arith.constant 0 : index
      %c0_15 = arith.constant 0 : index
      %17 = vector.load %arg6[%c0_14, %c0_15] : memref<8x1024xf32, #tpu.memory_space<vmem>>, vector<8x1024xf32>
      %18 = vector.extract_strided_slice %17 {offsets = [0, 0], sizes = [8, 512], strides = [1, 1]} : vector<8x1024xf32> to vector<8x512xf32>
      %19 = vector.broadcast %14 : vector<8x1xf32> to vector<8x512xf32>
      %20 = arith.mulf %18, %19 : vector<8x512xf32>
      %21 = vector.extract_strided_slice %17 {offsets = [0, 512], sizes = [8, 512], strides = [1, 1]} : vector<8x1024xf32> to vector<8x512xf32>
      %22 = vector.broadcast %14 : vector<8x1xf32> to vector<8x512xf32>
      %23 = arith.mulf %21, %22 : vector<8x512xf32>
      %24 = arith.mulf %20, %20 : vector<8x512xf32>
      %25 = arith.mulf %16, %16 : vector<1x512xf32>
      %cst_16 = arith.constant 2.000000e+00 : f32
      %26 = vector.broadcast %cst_16 : f32 to vector<1x512xf32>
      %27 = arith.mulf %26, %16 : vector<1x512xf32>
      %28 = arith.subf %25, %27 : vector<1x512xf32>
      %29 = vector.broadcast %28 : vector<1x512xf32> to vector<8x512xf32>
      %30 = arith.mulf %24, %29 : vector<8x512xf32>
      %31 = arith.addf %23, %30 : vector<8x512xf32>
      %cst_17 = arith.constant 0.000000e+00 : f32
      %32 = vector.broadcast %cst_17 : f32 to vector<8x512xf32>
      %33 = arith.maximumf %31, %32 : vector<8x512xf32>
      %cst_18 = arith.constant 9.99999974E-6 : f32
      %34 = vector.broadcast %cst_18 : f32 to vector<8x512xf32>
      %35 = arith.addf %33, %34 : vector<8x512xf32>
      %36 = math.rsqrt %35 : vector<8x512xf32>
      %37 = vector.broadcast %16 : vector<1x512xf32> to vector<8x512xf32>
      %38 = arith.mulf %20, %37 : vector<8x512xf32>
      %39 = tpu.concatenate %38, %36 in 1 : vector<8x512xf32>, vector<8x512xf32> -> vector<8x1024xf32>
      %c0_19 = arith.constant 0 : index
      %c0_20 = arith.constant 0 : index
      %40 = vector.load %arg6[%c0_19, %c0_20] : memref<8x1024xf32, #tpu.memory_space<vmem>>, vector<8x1024xf32>
      tpu.vector_store %arg6[%c0_19, %c0_20], %39 {strides = array<i32>} : memref<8x1024xf32, #tpu.memory_space<vmem>>, vector<8x1024xf32>,
    } else {
    }
    return
  }
  func.func @transform_0(%arg0: i32, %arg1: i32) -> (i32, i32) {
    %c0_i32 = arith.constant 0 : i32
    return %arg1, %arg0 : i32, i32
  }
  func.func @transform_1(%arg0: i32, %arg1: i32) -> (i32, i32) {
    %c0_i32 = arith.constant 0 : i32
    %c0_i32_0 = arith.constant 0 : i32
    return %arg1, %c0_i32 : i32, i32
  }
  func.func @transform_2(%arg0: i32, %arg1: i32) -> (i32, i32) {
    %c0_i32 = arith.constant 0 : i32
    %c0_i32_0 = arith.constant 0 : i32
    %c0_i32_1 = arith.constant 0 : i32
    return %c0_i32, %c0_i32_0 : i32, i32
  }
  func.func @transform_3(%arg0: i32, %arg1: i32) -> (i32, i32) {
    %c0_i32 = arith.constant 0 : i32
    %c0_i32_0 = arith.constant 0 : i32
    return %c0_i32, %arg0 : i32, i32
  }
  func.func @transform_4(%arg0: i32, %arg1: i32) -> (i32, i32) {
    %c0_i32 = arith.constant 0 : i32
    %c0_i32_0 = arith.constant 0 : i32
    return %c0_i32, %arg0 : i32, i32
  }
}

</mosaic_0001>

<llo_original>
// kernel: tpu_custom_call.1
$region0: #{tpu_custom_call.1}
  #allocation0 [shape = 'u32[]', space=smem, size = 0x4, offset = 0x4, fixed_abs, tag = 'smem constant byte address 0x4 - core index']
  #allocation1 [shape = 'u32[144,128]{1,0:T(1,128)}', space=vmem, size = 0x12000, scoped, tag = 'internal scratch']
  %s0 = inlined_call_operand.hbm [shape: f32[16,512], index: 0, kind: input, shape index: {}]
  %s1 = inlined_call_operand.vmem [shape: f32[16,8], index: 1, kind: input, shape index: {}]
  %s2 = inlined_call_operand.vmem [shape: f32[8,1], index: 2, kind: input, shape index: {}]
  %s3 = inlined_call_operand.vmem [shape: f32[3,512], index: 3, kind: input, shape index: {}]
  %s4 = inlined_call_operand.hbm [shape: f32[8,1024], index: 4, kind: output, shape index: {}]
  %s5 = sld [smem:[#allocation0]]
  $region38: #{tpu_custom_call.1} parent=0
    _
  %s7 = ssub.s32 1, %s5
  %s8 = scalar_select 0, %s7, %s5
  $region1: #{tpu_custom_call.1} parent=0
    #allocation2 [shape = 'u8[32768]{0}', space=vmem, size = 0x8000, scoped, tag = 'input window, operand 0, single buffered']
    #allocation3 [shape = 's32[1]{0}', space=sflag, size = 0x4, scoped, tag = 'scoped memory for tpu_custom_call.1']
    #allocation4 [shape = 's32[1]{0}', space=sflag, size = 0x4, scoped, tag = 'scoped memory for tpu_custom_call.1']
    #allocation5 [shape = 'u8[32768]{0}', space=vmem, size = 0x8000, scoped, tag = 'output window, operand 0, single buffered']
    %9 = vsyncpa [#allocation3], 0
    %10 = vsyncpa [#allocation4], 0
    // Predicated region
    $region2: #{tpu_custom_call.1} parent=1 // pred_check
      _
    $region3: #{tpu_custom_call.1} parent=1 // pred_check_branch
      %12 = sbr.rel (0) target = $region5
    $region4: #{tpu_custom_call.1} parent=1 // pred_region
      %s14 = ssub.s32 1024, 1024
      %15 = vsyncadd [#allocation3], %s14
      %s16 = sshll.u32 [#allocation2], 4
      %s17 = int_to_ptr.vmem [resolvable:$true] %s16
      %22 = dma.hbm_to_vmem [thread:$0]  %s0, 1024, %s17, [#allocation3], 512, 512, 32
    $region5: #{tpu_custom_call.1} parent=1 // pred_fallthru
      _
    // Predicated region
    $region6: #{tpu_custom_call.1} parent=1 // pred_check
      _
    $region7: #{tpu_custom_call.1} parent=1 // pred_check_branch
      %24 = sbr.rel (0) target = $region9
    $region8: #{tpu_custom_call.1} parent=1 // pred_region
      _
    $region9: #{tpu_custom_call.1} parent=1 // pred_fallthru
      _
    // Predicated region
    $region10: #{tpu_custom_call.1} parent=1 // pred_check
      _
    $region11: #{tpu_custom_call.1} parent=1 // pred_check_branch
      %26 = sbr.rel (0) target = $region13
    $region12: #{tpu_custom_call.1} parent=1 // pred_region
      _
    $region13: #{tpu_custom_call.1} parent=1 // pred_fallthru
      _
    // Predicated region
    $region14: #{tpu_custom_call.1} parent=1 // pred_check
      _
    $region15: #{tpu_custom_call.1} parent=1 // pred_check_branch
      %28 = sbr.rel (0) target = $region17
    $region16: #{tpu_custom_call.1} parent=1 // pred_region
      _
    $region17: #{tpu_custom_call.1} parent=1 // pred_fallthru
      _
    // Predicated region
    $region18: #{tpu_custom_call.1} parent=1 // pred_check
      _
    $region19: #{tpu_custom_call.1} parent=1 // pred_check_branch
      %30 = sbr.rel (0) target = $region21
    $region20: #{tpu_custom_call.1} parent=1 // pred_region
      %31 = dma.done [#allocation3], 1024
    $region21: #{tpu_custom_call.1} parent=1 // pred_fallthru
      _
    %p32 = scmp.eq.s32.totalorder 0, 0
    // Predicated region
    $region22: #{tpu_custom_call.1} parent=1 // pred_check
      %p33 = pneg %p32
    $region23: #{tpu_custom_call.1} parent=1 // pred_check_branch
      %35 = sbr.rel (%p33) target = $region25
    $region24: #{tpu_custom_call.1} parent=1 // pred_region
      %36 = vst [vmem:[#allocation5] sm:$0xff] 0.0
      %37 = vst [vmem:[#allocation5 + $0x8] sm:$0xff] 0.0
      %38 = vst [vmem:[#allocation5 + $0x10] sm:$0xff] 0.0
      %39 = vst [vmem:[#allocation5 + $0x18] sm:$0xff] 0.0
      %40 = vst [vmem:[#allocation5 + $0x20] sm:$0xff] 0.0
      %41 = vst [vmem:[#allocation5 + $0x28] sm:$0xff] 0.0
      %42 = vst [vmem:[#allocation5 + $0x30] sm:$0xff] 0.0
      %43 = vst [vmem:[#allocation5 + $0x38] sm:$0xff] 0.0
    $region25: #{tpu_custom_call.1} parent=1 // pred_fallthru
      _
    %v44 = vld [vmem:[#allocation2] sm:$0xff]
    %v45 = vld [vmem:[#allocation2 + $0x8] sm:$0xff]
    %v46 = vld [vmem:[#allocation2 + $0x10] sm:$0xff]
    %v47 = vld [vmem:[#allocation2 + $0x18] sm:$0xff]
    %v48 = vld [vmem:[#allocation2 + $0x20] sm:$0xff]
    %v49 = vld [vmem:[#allocation2 + $0x28] sm:$0xff]
    %v50 = vld [vmem:[#allocation2 + $0x30] sm:$0xff]
    %v51 = vld [vmem:[#allocation2 + $0x38] sm:$0xff]
    %v52 = vmul.f32 %v44, %v44
    %v53 = vmul.f32 %v45, %v45
    %v54 = vmul.f32 %v46, %v46
    %v55 = vmul.f32 %v47, %v47
    %v56 = vmul.f32 %v48, %v48
    %v57 = vmul.f32 %v49, %v49
    %v58 = vmul.f32 %v50, %v50
    %v59 = vmul.f32 %v51, %v51
    %v60 = vld [vmem:[%s1] sm:$0xff]
    %v61 = vld [vmem:[%s1 + $0x8] sm:$0xff]
    %v62 = vld [vmem:[#allocation5] sm:$0xff]
    %v63 = vld [vmem:[#allocation5 + $0x8] sm:$0xff]
    %v64 = vld [vmem:[#allocation5 + $0x10] sm:$0xff]
    %v65 = vld [vmem:[#allocation5 + $0x18] sm:$0xff]
    %v66 = vld [vmem:[#allocation5 + $0x20] sm:$0xff]
    %v67 = vld [vmem:[#allocation5 + $0x28] sm:$0xff]
    %v68 = vld [vmem:[#allocation5 + $0x30] sm:$0xff]
    %v69 = vld [vmem:[#allocation5 + $0x38] sm:$0xff]
    %70 = vxpose.xlu0.b32.start [1/16] %v60, 128
    %71 = vxpose.xlu0.b32.cont [2/16] %v61, 128
    %72 = vxpose.xlu0.b32.cont [3/16] 0.0, 128
    %73 = vxpose.xlu0.b32.cont [4/16] 0.0, 128
    %74 = vxpose.xlu0.b32.cont [5/16] 0.0, 128
    %75 = vxpose.xlu0.b32.cont [6/16] 0.0, 128
    %76 = vxpose.xlu0.b32.cont [7/16] 0.0, 128
    %77 = vxpose.xlu0.b32.cont [8/16] 0.0, 128
    %78 = vxpose.xlu0.b32.cont [9/16] 0.0, 128
    %79 = vxpose.xlu0.b32.cont [10/16] 0.0, 128
    %80 = vxpose.xlu0.b32.cont [11/16] 0.0, 128
    %81 = vxpose.xlu0.b32.cont [12/16] 0.0, 128
    %82 = vxpose.xlu0.b32.cont [13/16] 0.0, 128
    %83 = vxpose.xlu0.b32.cont [14/16] 0.0, 128
    %84 = vxpose.xlu0.b32.cont [15/16] 0.0, 128
    %85 = vxpose.xlu0.b32.end [16/16] 0.0, 128
    %v86 = vpop.trf.xlu0
    %v87 = vpop.trf.xlu0
    %v88 = vpop.trf.xlu0
    %v89 = vpop.trf.xlu0
    %v90 = vpop.trf.xlu0
    %v91 = vpop.trf.xlu0
    %v92 = vpop.trf.xlu0
    %v93 = vpop.trf.xlu0
    %v94 = vpop.trf.xlu0
    %v95 = vpop.trf.xlu0
    %v96 = vpop.trf.xlu0
    %v97 = vpop.trf.xlu0
    %v98 = vpop.trf.xlu0
    %v99 = vpop.trf.xlu0
    %v100 = vpop.trf.xlu0
    %v101 = vpop.trf.xlu0
    %vm102 = vcmask 130048
    %v104 = vsel %vm102, %v86, 0
    %106 = vmatprep.subr.mxu0 %v45
    %107 = vmatpush1.msra.mxu0 %v44
    %108 = vmatprep.subr.mxu0 %v49
    %109 = vmatpush1.msra.mxu0 %v48
    %110 = vmatprep.subr.mxu0 0.0
    %111 = vmatpush1.msra.mxu0 0.0
    %112 = vmatprep.subr.mxu0 0.0
    %113 = vmatpush1.msra.mxu0 0.0
    %114 = vmatprep.subr.mxu0 0.0
    %115 = vmatpush1.msra.mxu0 0.0
    %116 = vmatprep.subr.mxu0 0.0
    %117 = vmatpush1.msra.mxu0 0.0
    %118 = vmatprep.subr.mxu0 0.0
    %119 = vmatpush1.msra.mxu0 0.0
    %120 = vmatprep.subr.mxu0 0.0
    %121 = vmatpush1.msra.mxu0 0.0
    %122 = vmatprep.subr.mxu0 0.0
    %123 = vmatpush1.msra.mxu0 0.0
    %124 = vmatprep.subr.mxu0 0.0
    %125 = vmatpush1.msra.mxu0 0.0
    %126 = vmatprep.subr.mxu0 0.0
    %127 = vmatpush1.msra.mxu0 0.0
    %128 = vmatprep.subr.mxu0 0.0
    %129 = vmatpush1.msra.mxu0 0.0
    %130 = vmatprep.subr.mxu0 0.0
    %131 = vmatpush1.msra.mxu0 0.0
    %132 = vmatprep.subr.mxu0 0.0
    %133 = vmatpush1.msra.mxu0 0.0
    %134 = vmatprep.subr.mxu0 0.0
    %135 = vmatpush1.msra.mxu0 0.0
    %136 = vmatprep.subr.mxu0 0.0
    %137 = vmatpush1.msra.mxu0 0.0
    %138 = vmatprep.subr.mxu0 0.0
    %139 = vmatpush1.msra.mxu0 0.0
    %140 = vmatprep.subr.mxu0 0.0
    %141 = vmatpush1.msra.mxu0 0.0
    %142 = vmatprep.subr.mxu0 0.0
    %143 = vmatpush1.msra.mxu0 0.0
    %144 = vmatprep.subr.mxu0 0.0
    %145 = vmatpush1.msra.mxu0 0.0
    %146 = vmatprep.subr.mxu0 0.0
    %147 = vmatpush1.msra.mxu0 0.0
    %148 = vmatprep.subr.mxu0 0.0
    %149 = vmatpush1.msra.mxu0 0.0
    %150 = vmatprep.subr.mxu0 0.0
    %151 = vmatpush1.msra.mxu0 0.0
    %152 = vmatprep.subr.mxu0 0.0
    %153 = vmatpush1.msra.mxu0 0.0
    %154 = vmatprep.subr.mxu0 0.0
    %155 = vmatpush1.msra.mxu0 0.0
    %156 = vmatprep.subr.mxu0 0.0
    %157 = vmatpush1.msra.mxu0 0.0
    %158 = vmatprep.subr.mxu0 0.0
    %159 = vmatpush1.msra.mxu0 0.0
    %160 = vmatprep.subr.mxu0 0.0
    %161 = vmatpush1.msra.mxu0 0.0
    %162 = vmatprep.subr.mxu0 0.0
    %163 = vmatpush1.msra.mxu0 0.0
    %164 = vmatprep.subr.mxu0 0.0
    %165 = vmatpush1.msra.mxu0 0.0
    %166 = vmatprep.subr.mxu0 0.0
    %167 = vmatpush1.msra.mxu0 0.0
    %168 = vmatprep.subr.mxu0 0.0
    %169 = vmatpush1.msra.mxu0 0.0
    %170 = vmatprep.mubr.f32.mxu0 0.0
    %171 = vmatmul.mubr.f32.gmra.mrb[0].mxu0 %v104
    %v172 = vpop.f32.mrb[0].mxu0
    %v173 = vadd.f32 0.0, %v172
    %v174 = vpop.f32.mrb[0].mxu0
    %v175 = vadd.f32 0.0, %v174
    %176 = vdwg.mxu0
    %177 = vmatprep.subr.mxu0 %v47
    %178 = vmatpush1.msra.mxu0 %v46
    %179 = vmatprep.subr.mxu0 %v51
    %180 = vmatpush1.msra.mxu0 %v50
    %181 = vmatprep.subr.mxu0 0.0
    %182 = vmatpush1.msra.mxu0 0.0
    %183 = vmatprep.subr.mxu0 0.0
    %184 = vmatpush1.msra.mxu0 0.0
    %185 = vmatprep.subr.mxu0 0.0
    %186 = vmatpush1.msra.mxu0 0.0
    %187 = vmatprep.subr.mxu0 0.0
    %188 = vmatpush1.msra.mxu0 0.0
    %189 = vmatprep.subr.mxu0 0.0
    %190 = vmatpush1.msra.mxu0 0.0
    %191 = vmatprep.subr.mxu0 0.0
    %192 = vmatpush1.msra.mxu0 0.0
    %193 = vmatprep.subr.mxu0 0.0
    %194 = vmatpush1.msra.mxu0 0.0
    %195 = vmatprep.subr.mxu0 0.0
    %196 = vmatpush1.msra.mxu0 0.0
    %197 = vmatprep.subr.mxu0 0.0
    %198 = vmatpush1.msra.mxu0 0.0
    %199 = vmatprep.subr.mxu0 0.0
    %200 = vmatpush1.msra.mxu0 0.0
    %201 = vmatprep.subr.mxu0 0.0
    %202 = vmatpush1.msra.mxu0 0.0
    %203 = vmatprep.subr.mxu0 0.0
    %204 = vmatpush1.msra.mxu0 0.0
    %205 = vmatprep.subr.mxu0 0.0
    %206 = vmatpush1.msra.mxu0 0.0
    %207 = vmatprep.subr.mxu0 0.0
    %208 = vmatpush1.msra.mxu0 0.0
    %209 = vmatprep.subr.mxu0 0.0
    %210 = vmatpush1.msra.mxu0 0.0
    %211 = vmatprep.subr.mxu0 0.0
    %212 = vmatpush1.msra.mxu0 0.0
    %213 = vmatprep.subr.mxu0 0.0
    %214 = vmatpush1.msra.mxu0 0.0
    %215 = vmatprep.subr.mxu0 0.0
    %216 = vmatpush1.msra.mxu0 0.0
    %217 = vmatprep.subr.mxu0 0.0
    %218 = vmatpush1.msra.mxu0 0.0
    %219 = vmatprep.subr.mxu0 0.0
    %220 = vmatpush1.msra.mxu0 0.0
    %221 = vmatprep.subr.mxu0 0.0
    %222 = vmatpush1.msra.mxu0 0.0
    %223 = vmatprep.subr.mxu0 0.0
    %224 = vmatpush1.msra.mxu0 0.0
    %225 = vmatprep.subr.mxu0 0.0
    %226 = vmatpush1.msra.mxu0 0.0
    %227 = vmatprep.subr.mxu0 0.0
    %228 = vmatpush1.msra.mxu0 0.0
    %229 = vmatprep.subr.mxu0 0.0
    %230 = vmatpush1.msra.mxu0 0.0
    %231 = vmatprep.subr.mxu0 0.0
    %232 = vmatpush1.msra.mxu0 0.0
    %233 = vmatprep.subr.mxu0 0.0
    %234 = vmatpush1.msra.mxu0 0.0
    %235 = vmatprep.subr.mxu0 0.0
    %236 = vmatpush1.msra.mxu0 0.0
    %237 = vmatprep.subr.mxu0 0.0
    %238 = vmatpush1.msra.mxu0 0.0
    %239 = vmatprep.subr.mxu0 0.0
    %240 = vmatpush1.msra.mxu0 0.0
    %241 = vmatprep.mubr.f32.mxu0 0.0
    %242 = vmatmul.mubr.f32.gmra.mrb[0].mxu0 %v104
    %v243 = vpop.f32.mrb[0].mxu0
    %v244 = vadd.f32 0.0, %v243
    %v245 = vpop.f32.mrb[0].mxu0
    %v246 = vadd.f32 0.0, %v245
    %247 = vdwg.mxu0
    %248 = vmatprep.subr.mxu0 %v53
    %249 = vmatpush1.msra.mxu0 %v52
    %250 = vmatprep.subr.mxu0 %v57
    %251 = vmatpush1.msra.mxu0 %v56
    %252 = vmatprep.subr.mxu0 0.0
    %253 = vmatpush1.msra.mxu0 0.0
    %254 = vmatprep.subr.mxu0 0.0
    %255 = vmatpush1.msra.mxu0 0.0
    %256 = vmatprep.subr.mxu0 0.0
    %257 = vmatpush1.msra.mxu0 0.0
    %258 = vmatprep.subr.mxu0 0.0
    %259 = vmatpush1.msra.mxu0 0.0
    %260 = vmatprep.subr.mxu0 0.0
    %261 = vmatpush1.msra.mxu0 0.0
    %262 = vmatprep.subr.mxu0 0.0
    %263 = vmatpush1.msra.mxu0 0.0
    %264 = vmatprep.subr.mxu0 0.0
    %265 = vmatpush1.msra.mxu0 0.0
    %266 = vmatprep.subr.mxu0 0.0
    %267 = vmatpush1.msra.mxu0 0.0
    %268 = vmatprep.subr.mxu0 0.0
    %269 = vmatpush1.msra.mxu0 0.0
    %270 = vmatprep.subr.mxu0 0.0
    %271 = vmatpush1.msra.mxu0 0.0
    %272 = vmatprep.subr.mxu0 0.0
    %273 = vmatpush1.msra.mxu0 0.0
    %274 = vmatprep.subr.mxu0 0.0
    %275 = vmatpush1.msra.mxu0 0.0
    %276 = vmatprep.subr.mxu0 0.0
    %277 = vmatpush1.msra.mxu0 0.0
    %278 = vmatprep.subr.mxu0 0.0
    %279 = vmatpush1.msra.mxu0 0.0
    %280 = vmatprep.subr.mxu0 0.0
    %281 = vmatpush1.msra.mxu0 0.0
    %282 = vmatprep.subr.mxu0 0.0
    %283 = vmatpush1.msra.mxu0 0.0
    %284 = vmatprep.subr.mxu0 0.0
    %285 = vmatpush1.msra.mxu0 0.0
    %286 = vmatprep.subr.mxu0 0.0
    %287 = vmatpush1.msra.mxu0 0.0
    %288 = vmatprep.subr.mxu0 0.0
    %289 = vmatpush1.msra.mxu0 0.0
    %290 = vmatprep.subr.mxu0 0.0
    %291 = vmatpush1.msra.mxu0 0.0
    %292 = vmatprep.subr.mxu0 0.0
    %293 = vmatpush1.msra.mxu0 0.0
    %294 = vmatprep.subr.mxu0 0.0
    %295 = vmatpush1.msra.mxu0 0.0
    %296 = vmatprep.subr.mxu0 0.0
    %297 = vmatpush1.msra.mxu0 0.0
    %298 = vmatprep.subr.mxu0 0.0
    %299 = vmatpush1.msra.mxu0 0.0
    %300 = vmatprep.subr.mxu0 0.0
    %301 = vmatpush1.msra.mxu0 0.0
    %302 = vmatprep.subr.mxu0 0.0
    %303 = vmatpush1.msra.mxu0 0.0
    %304 = vmatprep.subr.mxu0 0.0
    %305 = vmatpush1.msra.mxu0 0.0
    %306 = vmatprep.subr.mxu0 0.0
    %307 = vmatpush1.msra.mxu0 0.0
    %308 = vmatprep.subr.mxu0 0.0
    %309 = vmatpush1.msra.mxu0 0.0
    %310 = vmatprep.subr.mxu0 0.0
    %311 = vmatpush1.msra.mxu0 0.0
    %312 = vmatprep.mubr.f32.mxu0 0.0
    %313 = vmatmul.mubr.f32.gmra.mrb[0].mxu0 %v104
    %v314 = vpop.f32.mrb[0].mxu0
    %v315 = vadd.f32 0.0, %v314
    %v316 = vpop.f32.mrb[0].mxu0
    %v317 = vadd.f32 0.0, %v316
    %318 = vdwg.mxu0
    %319 = vmatprep.subr.mxu0 %v55
    %320 = vmatpush1.msra.mxu0 %v54
    %321 = vmatprep.subr.mxu0 %v59
    %322 = vmatpush1.msra.mxu0 %v58
    %323 = vmatprep.subr.mxu0 0.0
    %324 = vmatpush1.msra.mxu0 0.0
    %325 = vmatprep.subr.mxu0 0.0
    %326 = vmatpush1.msra.mxu0 0.0
    %327 = vmatprep.subr.mxu0 0.0
    %328 = vmatpush1.msra.mxu0 0.0
    %329 = vmatprep.subr.mxu0 0.0
    %330 = vmatpush1.msra.mxu0 0.0
    %331 = vmatprep.subr.mxu0 0.0
    %332 = vmatpush1.msra.mxu0 0.0
    %333 = vmatprep.subr.mxu0 0.0
    %334 = vmatpush1.msra.mxu0 0.0
    %335 = vmatprep.subr.mxu0 0.0
    %336 = vmatpush1.msra.mxu0 0.0
    %337 = vmatprep.subr.mxu0 0.0
    %338 = vmatpush1.msra.mxu0 0.0
    %339 = vmatprep.subr.mxu0 0.0
    %340 = vmatpush1.msra.mxu0 0.0
    %341 = vmatprep.subr.mxu0 0.0
    %342 = vmatpush1.msra.mxu0 0.0
    %343 = vmatprep.subr.mxu0 0.0
    %344 = vmatpush1.msra.mxu0 0.0
    %345 = vmatprep.subr.mxu0 0.0
    %346 = vmatpush1.msra.mxu0 0.0
    %347 = vmatprep.subr.mxu0 0.0
    %348 = vmatpush1.msra.mxu0 0.0
    %349 = vmatprep.subr.mxu0 0.0
    %350 = vmatpush1.msra.mxu0 0.0
    %351 = vmatprep.subr.mxu0 0.0
    %352 = vmatpush1.msra.mxu0 0.0
    %353 = vmatprep.subr.mxu0 0.0
    %354 = vmatpush1.msra.mxu0 0.0
    %355 = vmatprep.subr.mxu0 0.0
    %356 = vmatpush1.msra.mxu0 0.0
    %357 = vmatprep.subr.mxu0 0.0
    %358 = vmatpush1.msra.mxu0 0.0
    %359 = vmatprep.subr.mxu0 0.0
    %360 = vmatpush1.msra.mxu0 0.0
    %361 = vmatprep.subr.mxu0 0.0
    %362 = vmatpush1.msra.mxu0 0.0
    %363 = vmatprep.subr.mxu0 0.0
    %364 = vmatpush1.msra.mxu0 0.0
    %365 = vmatprep.subr.mxu0 0.0
    %366 = vmatpush1.msra.mxu0 0.0
    %367 = vmatprep.subr.mxu0 0.0
    %368 = vmatpush1.msra.mxu0 0.0
    %369 = vmatprep.subr.mxu0 0.0
    %370 = vmatpush1.msra.mxu0 0.0
    %371 = vmatprep.subr.mxu0 0.0
    %372 = vmatpush1.msra.mxu0 0.0
    %373 = vmatprep.subr.mxu0 0.0
    %374 = vmatpush1.msra.mxu0 0.0
    %375 = vmatprep.subr.mxu0 0.0
    %376 = vmatpush1.msra.mxu0 0.0
    %377 = vmatprep.subr.mxu0 0.0
    %378 = vmatpush1.msra.mxu0 0.0
    %379 = vmatprep.subr.mxu0 0.0
    %380 = vmatpush1.msra.mxu0 0.0
    %381 = vmatprep.subr.mxu0 0.0
    %382 = vmatpush1.msra.mxu0 0.0
    %383 = vmatprep.mubr.f32.mxu0 0.0
    %384 = vmatmul.mubr.f32.gmra.mrb[0].mxu0 %v104
    %v385 = vpop.f32.mrb[0].mxu0
    %v386 = vadd.f32 0.0, %v385
    %v387 = vpop.f32.mrb[0].mxu0
    %v388 = vadd.f32 0.0, %v387
    %389 = vdwg.mxu0
    %v390 = vadd.f32 %v62, %v173
    %v391 = vadd.f32 %v63, %v175
    %v392 = vadd.f32 %v64, %v244
    %v393 = vadd.f32 %v65, %v246
    %v394 = vadd.f32 %v66, %v315
    %v395 = vadd.f32 %v67, %v317
    %v396 = vadd.f32 %v68, %v386
    %v397 = vadd.f32 %v69, %v388
    %398 = vst [vmem:[#allocation5] sm:$0xff] %v390
    %399 = vst [vmem:[#allocation5 + $0x8] sm:$0xff] %v391
    %400 = vst [vmem:[#allocation5 + $0x10] sm:$0xff] %v392
    %401 = vst [vmem:[#allocation5 + $0x18] sm:$0xff] %v393
    %402 = vst [vmem:[#allocation5 + $0x20] sm:$0xff] %v394
    %403 = vst [vmem:[#allocation5 + $0x28] sm:$0xff] %v395
    %404 = vst [vmem:[#allocation5 + $0x30] sm:$0xff] %v396
    %405 = vst [vmem:[#allocation5 + $0x38] sm:$0xff] %v397
    // Predicated region
    $region26: #{tpu_custom_call.1} parent=1 // pred_check
      %p406 = pneg %p32
    $region27: #{tpu_custom_call.1} parent=1 // pred_check_branch
      %408 = sbr.rel (%p406) target = $region29
    $region28: #{tpu_custom_call.1} parent=1 // pred_region
      %v409 = vld [vmem:[%s2] sm:$0xff]
      %v410 = vld [vmem:[%s3] sm:$0x77]
      %v411 = vld [vmem:[%s3 + $0x8] sm:$0x77]
      %v412 = vld [vmem:[#allocation5] sm:$0xff]
      %v413 = vld [vmem:[#allocation5 + $0x8] sm:$0xff]
      %v414 = vld [vmem:[#allocation5 + $0x10] sm:$0xff]
      %v415 = vld [vmem:[#allocation5 + $0x18] sm:$0xff]
      %v416 = vld [vmem:[#allocation5 + $0x20] sm:$0xff]
      %v417 = vld [vmem:[#allocation5 + $0x28] sm:$0xff]
      %v418 = vld [vmem:[#allocation5 + $0x30] sm:$0xff]
      %v419 = vld [vmem:[#allocation5 + $0x38] sm:$0xff]
      %421 = vset.pattern.permute.xlu0 0
      %422 = vperm.xlu0 %421, %v409
      %v423 = vpop.permute.xlu0 %422
      %v425 = vmul.f32 %v412, %v423
      %v426 = vmul.f32 %v413, %v423
      %v427 = vmul.f32 %v414, %v423
      %v428 = vmul.f32 %v415, %v423
      %v429 = vmul.f32 %v416, %v423
      %v430 = vmul.f32 %v417, %v423
      %v431 = vmul.f32 %v418, %v423
      %v432 = vmul.f32 %v419, %v423
      %v433 = vmul.f32 %v425, %v425
      %v434 = vmul.f32 %v426, %v426
      %v435 = vmul.f32 %v427, %v427
      %v436 = vmul.f32 %v428, %v428
      %v437 = vmul.f32 %v410, %v410
      %v438 = vmul.f32 %v411, %v411
      %v439 = vmul.f32 %v410, 2.0
      %v440 = vmul.f32 %v411, 2.0
      %v441 = vsub.f32 %v437, %v439
      %v442 = vsub.f32 %v438, %v440
      %v445 = vlaneseq
      %v446 = vshrl.u32 %v445, 7
      %v447 = vsub.s32 2, %v446
      %v448 = vrot.slane %v441, %v447
      %v449 = vlaneseq
      %v450 = vshrl.u32 %v449, 7
      %v451 = vsub.s32 6, %v450
      %v452 = vrot.slane %v441, %v451
      %v453 = vlaneseq
      %v454 = vshrl.u32 %v453, 7
      %v455 = vsub.s32 2, %v454
      %v456 = vrot.slane %v442, %v455
      %v457 = vlaneseq
      %v458 = vshrl.u32 %v457, 7
      %v459 = vsub.s32 6, %v458
      %v460 = vrot.slane %v442, %v459
      %v465 = vlaneseq
      %v466 = vshrl.u32 %v465, 7
      %v467 = vsub.s32 2, %v466
      %v468 = vrot.slane %v448, %v467
      %v469 = vlaneseq
      %v470 = vshrl.u32 %v469, 7
      %v471 = vsub.s32 2, %v470
      %v472 = vrot.slane %v452, %v471
      %v473 = vlaneseq
      %v474 = vshrl.u32 %v473, 7
      %v475 = vsub.s32 2, %v474
      %v476 = vrot.slane %v456, %v475
      %v477 = vlaneseq
      %v478 = vshrl.u32 %v477, 7
      %v479 = vsub.s32 2, %v478
      %v480 = vrot.slane %v460, %v479
      %v481 = vmul.f32 %v433, %v468
      %v482 = vmul.f32 %v434, %v472
      %v483 = vmul.f32 %v435, %v476
      %v484 = vmul.f32 %v436, %v480
      %v485 = vadd.f32 %v429, %v481
      %v486 = vadd.f32 %v430, %v482
      %v487 = vadd.f32 %v431, %v483
      %v488 = vadd.f32 %v432, %v484
      %v489 = vmax.f32 %v485, 0.0
      %v490 = vmax.f32 %v486, 0.0
      %v491 = vmax.f32 %v487, 0.0
      %v492 = vmax.f32 %v488, 0.0
      %v493 = vadd.f32 %v489, 1e-05
      %v494 = vadd.f32 %v490, 1e-05
      %v495 = vadd.f32 %v491, 1e-05
      %v496 = vadd.f32 %v492, 1e-05
      %v497 = vrsqrt.pop %v493
      %v498 = vrsqrt.pop %v494
      %v499 = vrsqrt.pop %v495
      %v500 = vrsqrt.pop %v496
      %v503 = vlaneseq
      %v504 = vshrl.u32 %v503, 7
      %v505 = vsub.s32 2, %v504
      %v506 = vrot.slane %v410, %v505
      %v507 = vlaneseq
      %v508 = vshrl.u32 %v507, 7
      %v509 = vsub.s32 6, %v508
      %v510 = vrot.slane %v410, %v509
      %v511 = vlaneseq
      %v512 = vshrl.u32 %v511, 7
      %v513 = vsub.s32 2, %v512
      %v514 = vrot.slane %v411, %v513
      %v515 = vlaneseq
      %v516 = vshrl.u32 %v515, 7
      %v517 = vsub.s32 6, %v516
      %v518 = vrot.slane %v411, %v517
      %v523 = vlaneseq
      %v524 = vshrl.u32 %v523, 7
      %v525 = vsub.s32 2, %v524
      %v526 = vrot.slane %v506, %v525
      %v527 = vlaneseq
      %v528 = vshrl.u32 %v527, 7
      %v529 = vsub.s32 2, %v528
      %v530 = vrot.slane %v510, %v529
      %v531 = vlaneseq
      %v532 = vshrl.u32 %v531, 7
      %v533 = vsub.s32 2, %v532
      %v534 = vrot.slane %v514, %v533
      %v535 = vlaneseq
      %v536 = vshrl.u32 %v535, 7
      %v537 = vsub.s32 2, %v536
      %v538 = vrot.slane %v518, %v537
      %v539 = vmul.f32 %v425, %v526
      %v540 = vmul.f32 %v426, %v530
      %v541 = vmul.f32 %v427, %v534
      %v542 = vmul.f32 %v428, %v538
      %543 = vst [vmem:[#allocation5] sm:$0xff] %v539
      %544 = vst [vmem:[#allocation5 + $0x8] sm:$0xff] %v540
      %545 = vst [vmem:[#allocation5 + $0x10] sm:$0xff] %v541
      %546 = vst [vmem:[#allocation5 + $0x18] sm:$0xff] %v542
      %547 = vst [vmem:[#allocation5 + $0x20] sm:$0xff] %v497
      %548 = vst [vmem:[#allocation5 + $0x28] sm:$0xff] %v498
      %549 = vst [vmem:[#allocation5 + $0x30] sm:$0xff] %v499
      %550 = vst [vmem:[#allocation5 + $0x38] sm:$0xff] %v500
    $region29: #{tpu_custom_call.1} parent=1 // pred_fallthru
      _
    // Predicated region
    $region30: #{tpu_custom_call.1} parent=1 // pred_check
      _
    $region31: #{tpu_custom_call.1} parent=1 // pred_check_branch
      %552 = sbr.rel (0) target = $region33
    $region32: #{tpu_custom_call.1} parent=1 // pred_region
      %s554 = ssub.s32 1024, 1024
      %555 = vsyncadd [#allocation4], %s554
      %s557 = sshll.u32 [#allocation5], 4
      %s558 = int_to_ptr.vmem [resolvable:$true] %s557
      %560 = dma.vmem_to_hbm [thread:$0]  %s558, 1024, %s4, [#allocation4]
    $region33: #{tpu_custom_call.1} parent=1 // pred_fallthru
      _
    // Predicated region
    $region34: #{tpu_custom_call.1} parent=1 // pred_check
      _
    $region35: #{tpu_custom_call.1} parent=1 // pred_check_branch
      %562 = sbr.rel (0) target = $region37
    $region36: #{tpu_custom_call.1} parent=1 // pred_region
      %563 = dma.done [#allocation4], 1024
    $region37: #{tpu_custom_call.1} parent=1 // pred_fallthru
      _
    %564 = vsyncpa [#allocation3], 1
    %565 = vsyncpa [#allocation4], 1

</llo_original>
